<compile_context>
chip_gen: v7x
topology: tpu7x:2x2x1
jax: 0.10.0
libtpu: 0.0.40
codegen_flags: <defaults>
</compile_context>

<pallas_src>
import jax
import jax.numpy as jnp
from jax.experimental import pallas as pl
from jax.experimental.pallas import tpu as pltpu


def _crazy_kernel(x_ref, w_ref, fused_ref, o_ref):
    # x:(1,128) bf16, w:(128,128) bf16 already in (in, out) layout,
    # fused:(1,128) f32 = avg + 1e-8 * bias
    y = jnp.dot(x_ref[...], w_ref[...], preferred_element_type=jnp.float32)
    o_ref[...] = fused_ref[...] + jnp.float32(1e-8) * y


def crazy_forward(x, weight, bias, avg):
    """x: arbitrary-shaped float32 array with >= 128 elements (e.g. NCHW).

    weight: (128, 128) in PyTorch nn.Linear convention (out_features, in_features)
    bias:   (128,)
    avg:    (1, 128)
    """
    x_flat = x.reshape(1, -1)
    if x_flat.shape[1] < 128:
        # The original module's nn.Linear(128, 128) would also fail here.
        raise ValueError(
            f"Input must have at least 128 elements after flatten, got {x_flat.shape[1]}."
        )
    x_flat = x_flat[:, :128]

    # One-time XLA-side prep (outside the kernel hot path):
    x_bf16 = x_flat.astype(jnp.bfloat16)                     # (1, 128)
    w_t = jnp.transpose(weight).astype(jnp.bfloat16)          # (in=128, out=128)
    fused = (
        avg.reshape(1, 128).astype(jnp.float32)
        + jnp.float32(1e-8) * bias.reshape(1, 128).astype(jnp.float32)
    )                                                          # (1, 128) f32

    bytes_accessed = (
        1 * 128 * 2        # x  (bf16)
        + 128 * 128 * 2    # W  (bf16)
        + 1 * 128 * 4      # fused (f32)
        + 1 * 128 * 4      # out (f32)
    )

    out = pl.pallas_call(
        _crazy_kernel,
        out_shape=jax.ShapeDtypeStruct((1, 128), jnp.float32),
        in_specs=[
            pl.BlockSpec(memory_space=pltpu.MemorySpace.VMEM),   # x
            pl.BlockSpec(memory_space=pltpu.MemorySpace.VMEM),   # W (pre-transposed)
            pl.BlockSpec(memory_space=pltpu.MemorySpace.VMEM),   # fused (avg + 1e-8*b)
        ],
        out_specs=pl.BlockSpec(memory_space=pltpu.MemorySpace.VMEM),
        cost_estimate=pl.CostEstimate(
            flops=2 * 128 * 128,
            bytes_accessed=bytes_accessed,
            transcendentals=0,
        ),
    )(x_bf16, w_t, fused)
    return out


if __name__ == "__main__":
    key = jax.random.PRNGKey(0)
    k_x, k_w, k_b, k_avg = jax.random.split(key, 4)

    # Synthetic input (NCHW-like, flattened inside forward): (2, 4, 16, 16)
    x = jax.random.normal(k_x, (2, 4, 16, 16), dtype=jnp.float32)

    # Deterministic synthetic parameters.
    # nn.Linear(128, 128): weight (128, 128), bias (128,)
    weight = jax.random.normal(k_w, (128, 128), dtype=jnp.float32) * 0.05
    bias = jax.random.normal(k_b, (128,), dtype=jnp.float32) * 0.05
    # self.avg: mean ligand embedding, shape (1, 128).
    # TODO(synk): original code loads this from a pickle of ligand embeddings;
    # here it is synthesized deterministically instead.
    avg = jax.random.normal(k_avg, (1, 128), dtype=jnp.float32)

    out = crazy_forward(x, weight, bias, avg)
    out = jax.block_until_ready(out)

    # Reference check in plain f32 JAX (same math as the PyTorch module).
    # Note: bf16 matmul error is ~1e-3 on the raw matmul term, but the 1e-8
    # output scale makes it ~1e-11 on the final output, well inside tolerance.
    x_flat = x.reshape(1, -1)[:, :128]
    ref = avg + 1e-8 * (x_flat @ weight.T + bias.reshape(1, 128))
    assert out.shape == (1, 128)
    assert jnp.allclose(out, ref, atol=1e-6, rtol=1e-6)

    print("KERNEL_OK")
</pallas_src>

<mosaic_0001>
module attributes {stable_mosaic.version = 11 : i64} {
  func.func @_crazy_kernel(%arg0: memref<1x128xbf16, #tpu.memory_space<vmem>>, %arg1: memref<128x128xbf16, #tpu.memory_space<vmem>>, %arg2: memref<1x128xf32, #tpu.memory_space<vmem>>, %arg3: memref<1x128xf32, #tpu.memory_space<vmem>>) attributes {dimension_semantics = [], scalar_prefetch = 0 : i64, scratch_operands = 0 : i64, tpu.core_type = #tpu.core_type<tc>} {
    %c0 = arith.constant 0 : index
    %c0_0 = arith.constant 0 : index
    %0 = vector.load %arg0[%c0, %c0_0] : memref<1x128xbf16, #tpu.memory_space<vmem>>, vector<1x128xbf16>
    %c0_1 = arith.constant 0 : index
    %c0_2 = arith.constant 0 : index
    %1 = vector.load %arg1[%c0_1, %c0_2] : memref<128x128xbf16, #tpu.memory_space<vmem>>, vector<128x128xbf16>
    %cst = arith.constant dense<0.000000e+00> : vector<1x128xf32>
    %2 = tpu.matmul %0, %1, %cst {dimension_numbers = #tpu.dot_dimension_numbers<[1], [0], [0], [1], [0, 0, 1, 1], [], []>} : vector<1x128xbf16>, vector<128x128xbf16>, vector<1x128xf32> -> vector<1x128xf32>
    %c0_3 = arith.constant 0 : index
    %c0_4 = arith.constant 0 : index
    %3 = vector.load %arg2[%c0_3, %c0_4] : memref<1x128xf32, #tpu.memory_space<vmem>>, vector<1x128xf32>
    %cst_5 = arith.constant 9.99999993E-9 : f32
    %4 = vector.broadcast %cst_5 : f32 to vector<1x128xf32>
    %5 = arith.mulf %4, %2 : vector<1x128xf32>
    %6 = arith.addf %3, %5 : vector<1x128xf32>
    %c0_6 = arith.constant 0 : index
    %c0_7 = arith.constant 0 : index
    %7 = vector.load %arg3[%c0_6, %c0_7] : memref<1x128xf32, #tpu.memory_space<vmem>>, vector<1x128xf32>
    tpu.vector_store %arg3[%c0_6, %c0_7], %6 {strides = array<i32>} : memref<1x128xf32, #tpu.memory_space<vmem>>, vector<1x128xf32>,
    return
  }
}

</mosaic_0001>

<llo_original>
// kernel: tpu_custom_call.1
$region0: #{tpu_custom_call.1}
  #allocation0 [shape = 'u32[]', space=smem, size = 0x4, offset = 0x4, fixed_abs, tag = 'smem constant byte address 0x4 - core index']
  #allocation1 [shape = 'u32[144,128]{1,0:T(1,128)}', space=vmem, size = 0x12000, scoped, tag = 'internal scratch']
  %s0 = inlined_call_operand.hbm [shape: bf16[1,128], index: 0, kind: input, shape index: {}]
  %s1 = inlined_call_operand.hbm [shape: bf16[128,128], index: 1, kind: input, shape index: {}]
  %s2 = inlined_call_operand.vmem [shape: f32[1,128], index: 2, kind: input, shape index: {}]
  %s3 = inlined_call_operand.hbm [shape: f32[1,128], index: 3, kind: output, shape index: {}]
  %s4 = sld [smem:[#allocation0]]
  $region30: #{tpu_custom_call.1} parent=0
    _
  %s6 = ssub.s32 1, %s4
  %s7 = scalar_select 0, %s6, %s4
  $region1: #{tpu_custom_call.1} parent=0
    #allocation2 [shape = 'u8[512]{0}', space=vmem, size = 0x400, scoped, tag = 'input window, operand 0, single buffered']
    #allocation3 [shape = 's32[1]{0}', space=sflag, size = 0x4, scoped, tag = 'scoped memory for tpu_custom_call.1']
    #allocation4 [shape = 's32[1]{0}', space=sflag, size = 0x4, scoped, tag = 'scoped memory for tpu_custom_call.1']
    #allocation5 [shape = 'u8[32768]{0}', space=vmem, size = 0x8000, scoped, tag = 'input window, operand 1, single buffered']
    #allocation6 [shape = 's32[1]{0}', space=sflag, size = 0x4, scoped, tag = 'scoped memory for tpu_custom_call.1']
    #allocation7 [shape = 'u8[512]{0}', space=vmem, size = 0x400, scoped, tag = 'output window, operand 0, single buffered']
    %8 = vsyncpa [#allocation3], 0
    %9 = vsyncpa [#allocation6], 0
    %10 = vsyncpa [#allocation4], 0
    // Predicated region
    $region2: #{tpu_custom_call.1} parent=1 // pred_check
      _
    $region3: #{tpu_custom_call.1} parent=1 // pred_check_branch
      %12 = sbr.rel (0) target = $region5
    $region4: #{tpu_custom_call.1} parent=1 // pred_region
      %s14 = ssub.s32 16, 16
      %15 = vsyncadd [#allocation3], %s14
      %s17 = sshll.u32 [#allocation2], 4
      %s18 = int_to_ptr.vmem [resolvable:$true] %s17
      %20 = dma.hbm_to_vmem [thread:$0]  %s0, 16, %s18, [#allocation3]
    $region5: #{tpu_custom_call.1} parent=1 // pred_fallthru
      _
    // Predicated region
    $region6: #{tpu_custom_call.1} parent=1 // pred_check
      _
    $region7: #{tpu_custom_call.1} parent=1 // pred_check_branch
      %22 = sbr.rel (0) target = $region9
    $region8: #{tpu_custom_call.1} parent=1 // pred_region
      %s24 = ssub.s32 1024, 1024
      %25 = vsyncadd [#allocation6], %s24
      %s26 = sshll.u32 [#allocation5], 4
      %s27 = int_to_ptr.vmem [resolvable:$true] %s26
      %32 = dma.hbm_to_vmem [thread:$0]  %s1, 1024, %s27, [#allocation6], 64, 64, 4
    $region9: #{tpu_custom_call.1} parent=1 // pred_fallthru
      _
    // Predicated region
    $region10: #{tpu_custom_call.1} parent=1 // pred_check
      _
    $region11: #{tpu_custom_call.1} parent=1 // pred_check_branch
      %34 = sbr.rel (0) target = $region13
    $region12: #{tpu_custom_call.1} parent=1 // pred_region
      _
    $region13: #{tpu_custom_call.1} parent=1 // pred_fallthru
      _
    // Predicated region
    $region14: #{tpu_custom_call.1} parent=1 // pred_check
      _
    $region15: #{tpu_custom_call.1} parent=1 // pred_check_branch
      %36 = sbr.rel (0) target = $region17
    $region16: #{tpu_custom_call.1} parent=1 // pred_region
      %37 = dma.done [#allocation3], 16
    $region17: #{tpu_custom_call.1} parent=1 // pred_fallthru
      _
    // Predicated region
    $region18: #{tpu_custom_call.1} parent=1 // pred_check
      _
    $region19: #{tpu_custom_call.1} parent=1 // pred_check_branch
      %39 = sbr.rel (0) target = $region21
    $region20: #{tpu_custom_call.1} parent=1 // pred_region
      %40 = dma.done [#allocation6], 1024
    $region21: #{tpu_custom_call.1} parent=1 // pred_fallthru
      _
    %v42 = vld [vmem:[#allocation2] sm:$0x1]
    %v43 = vld [vmem:[#allocation5] sm:$0xf]
    %v44 = vld [vmem:[#allocation5 + $0x4] sm:$0xf]
    %v45 = vld [vmem:[#allocation5 + $0x8] sm:$0xf]
    %v46 = vld [vmem:[#allocation5 + $0xc] sm:$0xf]
    %v47 = vld [vmem:[#allocation5 + $0x10] sm:$0xf]
    %v48 = vld [vmem:[#allocation5 + $0x14] sm:$0xf]
    %v49 = vld [vmem:[#allocation5 + $0x18] sm:$0xf]
    %v50 = vld [vmem:[#allocation5 + $0x1c] sm:$0xf]
    %v51 = vld [vmem:[#allocation5 + $0x20] sm:$0xf]
    %v52 = vld [vmem:[#allocation5 + $0x24] sm:$0xf]
    %v53 = vld [vmem:[#allocation5 + $0x28] sm:$0xf]
    %v54 = vld [vmem:[#allocation5 + $0x2c] sm:$0xf]
    %v55 = vld [vmem:[#allocation5 + $0x30] sm:$0xf]
    %v56 = vld [vmem:[#allocation5 + $0x34] sm:$0xf]
    %v57 = vld [vmem:[#allocation5 + $0x38] sm:$0xf]
    %v58 = vld [vmem:[#allocation5 + $0x3c] sm:$0xf]
    %v75 = vunpack.c.l.b16 %v43
    %v76 = vunpack.c.l.b16 %v44
    %v77 = vunpack.c.l.b16 %v45
    %v78 = vunpack.c.l.b16 %v46
    %v79 = vunpack.c.l.b16 %v47
    %v80 = vunpack.c.l.b16 %v48
    %v81 = vunpack.c.l.b16 %v49
    %v82 = vunpack.c.l.b16 %v50
    %v83 = vunpack.c.l.b16 %v51
    %v84 = vunpack.c.l.b16 %v52
    %v85 = vunpack.c.l.b16 %v53
    %v86 = vunpack.c.l.b16 %v54
    %v87 = vunpack.c.l.b16 %v55
    %v88 = vunpack.c.l.b16 %v56
    %v89 = vunpack.c.l.b16 %v57
    %v90 = vunpack.c.l.b16 %v58
    %v91 = vpack.c.b16 %v76, %v75
    %v92 = vpack.c.b16 %v78, %v77
    %v93 = vpack.c.b16 %v80, %v79
    %v94 = vpack.c.b16 %v82, %v81
    %v95 = vpack.c.b16 %v84, %v83
    %v96 = vpack.c.b16 %v86, %v85
    %v97 = vpack.c.b16 %v88, %v87
    %v98 = vpack.c.b16 %v90, %v89
    %107 = vmatprep.subr.bf16.mxu0 0
    %108 = vmatpush1.bf16.msra.mxu0 %v91
    %109 = vmatprep.subr.bf16.mxu0 0
    %110 = vmatpush1.bf16.msra.mxu0 %v92
    %111 = vmatprep.subr.bf16.mxu0 0
    %112 = vmatpush1.bf16.msra.mxu0 %v93
    %113 = vmatprep.subr.bf16.mxu0 0
    %114 = vmatpush1.bf16.msra.mxu0 %v94
    %115 = vmatprep.subr.bf16.mxu0 0
    %116 = vmatpush1.bf16.msra.mxu0 %v95
    %117 = vmatprep.subr.bf16.mxu0 0
    %118 = vmatpush1.bf16.msra.mxu0 %v96
    %119 = vmatprep.subr.bf16.mxu0 0
    %120 = vmatpush1.bf16.msra.mxu0 %v97
    %121 = vmatprep.subr.bf16.mxu0 0
    %122 = vmatpush1.bf16.msra.mxu0 %v98
    %123 = vmatprep.subr.bf16.mxu0 0
    %124 = vmatpush1.bf16.msra.mxu0 0
    %125 = vmatprep.subr.bf16.mxu0 0
    %126 = vmatpush1.bf16.msra.mxu0 0
    %127 = vmatprep.subr.bf16.mxu0 0
    %128 = vmatpush1.bf16.msra.mxu0 0
    %129 = vmatprep.subr.bf16.mxu0 0
    %130 = vmatpush1.bf16.msra.mxu0 0
    %131 = vmatprep.subr.bf16.mxu0 0
    %132 = vmatpush1.bf16.msra.mxu0 0
    %133 = vmatprep.subr.bf16.mxu0 0
    %134 = vmatpush1.bf16.msra.mxu0 0
    %135 = vmatprep.subr.bf16.mxu0 0
    %136 = vmatpush1.bf16.msra.mxu0 0
    %137 = vmatprep.subr.bf16.mxu0 0
    %138 = vmatpush1.bf16.msra.mxu0 0
    %139 = vmatprep.mubr.bf16.mxu0 0
    %140 = vmatmul.mubr.bf16.gmra.mrb[0].mxu0 %v42
    %v141 = vpop.f32.mrb[0].mxu0
    %v142 = vadd.f32 0.0, %v141
    %v143 = vpop.f32.mrb[0].mxu0
    %v144 = vpop.f32.mrb[0].mxu0
    %v145 = vpop.f32.mrb[0].mxu0
    %146 = vdwg.mxu0
    %v147 = vld [vmem:[%s2] sm:$0x1]
    %v148 = vmul.f32 %v142, 1e-08
    %v149 = vadd.f32 %v147, %v148
    %150 = vst [vmem:[#allocation7] sm:$0x1] %v149
    // Predicated region
    $region22: #{tpu_custom_call.1} parent=1 // pred_check
      _
    $region23: #{tpu_custom_call.1} parent=1 // pred_check_branch
      %152 = sbr.rel (0) target = $region25
    $region24: #{tpu_custom_call.1} parent=1 // pred_region
      %s154 = ssub.s32 16, 16
      %155 = vsyncadd [#allocation4], %s154
      %s157 = sshll.u32 [#allocation7], 4
      %s158 = int_to_ptr.vmem [resolvable:$true] %s157
      %160 = dma.vmem_to_hbm [thread:$0]  %s158, 16, %s3, [#allocation4]
    $region25: #{tpu_custom_call.1} parent=1 // pred_fallthru
      _
    // Predicated region
    $region26: #{tpu_custom_call.1} parent=1 // pred_check
      _
    $region27: #{tpu_custom_call.1} parent=1 // pred_check_branch
      %162 = sbr.rel (0) target = $region29
    $region28: #{tpu_custom_call.1} parent=1 // pred_region
      %163 = dma.done [#allocation4], 16
    $region29: #{tpu_custom_call.1} parent=1 // pred_fallthru
      _
    %164 = vsyncpa [#allocation3], 1
    %165 = vsyncpa [#allocation6], 1
    %166 = vsyncpa [#allocation4], 1

</llo_original>
